<compile_context>
chip_gen: v5e
topology: v5e:2x2
jax: 0.10.0
libtpu: 0.0.40
codegen_flags: <defaults>
</compile_context>

<pallas_src>
import functools

import jax
import jax.numpy as jnp
from jax.experimental import pallas as pl
from jax.experimental.pallas import tpu as pltpu

BN_EPS = 1e-3   # matches nn.BatchNorm2d(eps=0.001)
_LANE = 128
_SUBLANE = 8


def _round_up(x, m):
    return ((x + m - 1) // m) * m


def _vmem_limit_bytes():
    # Generation-aware VMEM budget: ~75% of physical (v5e/v6e: 96 MiB, v7x: 48 MiB).
    try:
        cap = pltpu.get_tpu_info().vmem_capacity_bytes
        return int(cap * 3 // 4)
    except Exception:
        return None   # fall back to the compiler's default scoped limit


# ----------------------------------------------------------------------------- kernels


def _conv_stats_kernel(p_ref, w_ref, y_ref, stats_ref, acc_ref):
    # p_ref:    (TM, TK) im2col rows (f32 or bf16)
    # w_ref:    (TK, Cp) reshaped conv weight (f32 or bf16)
    # y_ref:    (TM, Cp) pre-BN conv output tile, stored in y dtype (f32 or bf16)
    # stats_ref:(8, Cp) f32, row 0 = per-channel sum, row 1 = per-channel sum of squares
    # acc_ref:  (TM, Cp) f32 accumulator scratch (persists across the K grid axis)
    k = pl.program_id(1)
    prod = jnp.dot(p_ref[...], w_ref[...], preferred_element_type=jnp.float32)   # MXU, f32 acc

    @pl.when(k == 0)
    def _():
        acc_ref[...] = prod

    @pl.when(k > 0)
    def _():
        acc_ref[...] += prod

    @pl.when(k == pl.num_programs(1) - 1)
    def _():
        y = acc_ref[...]                              # f32 — stats stay in f32
        y_ref[...] = y.astype(y_ref.dtype)
        s1 = jnp.sum(y, axis=0, keepdims=True)        # (1, Cp)
        s2 = jnp.sum(y * y, axis=0, keepdims=True)    # (1, Cp)
        rows = jax.lax.broadcasted_iota(jnp.int32, stats_ref.shape, 0)
        stats_ref[...] = jnp.where(rows == 0, s1, 0.0) + jnp.where(rows == 1, s2, 0.0)


def _bn_relu_kernel(y_ref, scale_ref, bias_ref, o_ref):
    # y_ref: (TM2, Cp); scale_ref/bias_ref: (1, Cp) f32 folded BN params; o_ref aliases y_ref's HBM.
    y = y_ref[...].astype(jnp.float32)
    o_ref[...] = jnp.maximum(y * scale_ref[...] + bias_ref[...], 0.0).astype(o_ref.dtype)


# ----------------------------------------------------------------------------- im2col glue


def _patches(x, kh, kw, stride, padding):
    # x: (N, C, H, W) -> (N*OH*OW, C*kh*kw); pure layout glue (no math).
    N, C, H, W = x.shape
    OH = (H + 2 * padding - kh) // stride + 1
    OW = (W + 2 * padding - kw) // stride + 1
    if kh == 1 and kw == 1 and padding == 0:
        # 1x1 fast path: no patch materialization, just NCHW -> (rows, C).
        p = x[:, :, ::stride, ::stride].transpose(0, 2, 3, 1).reshape(N * OH * OW, C)
        return p, OH, OW
    xp = jnp.pad(x, ((0, 0), (0, 0), (padding, padding), (padding, padding)))
    cols = []
    for i in range(kh):
        for j in range(kw):
            cols.append(xp[:, :, i:i + stride * OH:stride, j:j + stride * OW:stride])
    p = jnp.stack(cols, axis=2)             # (N, C, kh*kw, OH, OW)
    p = p.transpose(0, 3, 4, 1, 2)          # (N, OH, OW, C, kh*kw)
    return p.reshape(N * OH * OW, C * kh * kw), OH, OW


# ----------------------------------------------------------------------------- wrapper


def basic_conv2d(x, weight, gamma, beta, *, stride=1, padding=0,
                 block_m=1024, block_m2=4096, block_k=2048,
                 compute_dtype=jnp.float32, channels_last_out=False):
    """Forward of BasicConv2d (conv bias=False -> train-mode BatchNorm2d -> ReLU).

    x:      (N, Cin, H, W) float32   (NCHW, like PyTorch)
    weight: (Cout, Cin, kh, kw)      (OIHW, like nn.Conv2d.weight)
    gamma, beta: (Cout,)             (BatchNorm2d affine params)
    compute_dtype: matmul-operand / y-intermediate dtype. f32 preserves exact PyTorch-f32
        semantics; bf16 halves HBM/VMEM bytes (f32 MXU accumulation, f32 BN stats).
    channels_last_out: return NHWC (kernel-native layout, no trailing transpose).
    returns (N, Cout, OH, OW) float32 (or (N, OH, OW, Cout) if channels_last_out).
    """
    N, Cin, H, W = x.shape
    Cout, _, kh, kw = weight.shape
    compute_dtype = jnp.dtype(compute_dtype)
    y_dtype = compute_dtype                        # pre-BN intermediate dtype

    patches, OH, OW = _patches(x.astype(jnp.float32), kh, kw, stride, padding)
    M, K = patches.shape

    # --- TPU-friendly padded/tile geometry ----------------------------------------------
    Cp = _round_up(Cout, _LANE)                    # channels on lanes -> unmasked vst streams
    Kp_base = _round_up(K, _LANE)                  # lane-dense / packing-clean K
    num_k = max(1, -(-Kp_base // _round_up(block_k, _LANE)))
    TK = _round_up(-(-Kp_base // num_k), _LANE)
    Kp = num_k * TK
    TM = _round_up(min(block_m, _round_up(M, _SUBLANE)), _SUBLANE)
    TM2 = min(max(TM, (block_m2 // TM) * TM), _round_up(M, TM))   # pass-2 tile, multiple of TM
    Mp = _round_up(M, TM2)
    num_m = Mp // TM
    num_m2 = Mp // TM2

    patches = jnp.pad(patches, ((0, Mp - M), (0, Kp - K))).astype(compute_dtype)
    w_mat = weight.reshape(Cout, K).T.astype(jnp.float32)          # (K, Cout)
    w_mat = jnp.pad(w_mat, ((0, Kp - K), (0, Cp - Cout))).astype(compute_dtype)

    vmem_limit = _vmem_limit_bytes()
    cparams1 = pltpu.CompilerParams(
        dimension_semantics=("parallel", "arbitrary"),   # row tiles split across TCs (v7x)
        vmem_limit_bytes=vmem_limit)
    cparams2 = pltpu.CompilerParams(
        dimension_semantics=("parallel",),
        vmem_limit_bytes=vmem_limit)

    op_bytes = compute_dtype.itemsize
    y_bytes = jnp.dtype(y_dtype).itemsize
    cost1 = pl.CostEstimate(
        flops=2 * Mp * Kp * Cp,
        transcendentals=0,
        bytes_accessed=(Mp * Kp * op_bytes + Kp * Cp * op_bytes
                        + Mp * Cp * y_bytes + num_m * _SUBLANE * Cp * 4))

    # Weight block index is constant when K fits in one block -> single-buffer it.
    if num_k == 1:
        w_spec = pl.BlockSpec((TK, Cp), lambda i, k: (0, 0), pipeline_mode=pl.Buffered(1))
    else:
        w_spec = pl.BlockSpec((TK, Cp), lambda i, k: (k, 0))

    # ---- pass 1: tiled conv-as-matmul (K-reduction axis) + per-tile channel stats -------
    y, stats = pl.pallas_call(
        _conv_stats_kernel,
        grid_spec=pltpu.PrefetchScalarGridSpec(
            num_scalar_prefetch=0,
            grid=(num_m, num_k),
            in_specs=[
                pl.BlockSpec((TM, TK), lambda i, k: (i, k)),
                w_spec,
            ],
            out_specs=[
                pl.BlockSpec((TM, Cp), lambda i, k: (i, 0)),
                pl.BlockSpec((_SUBLANE, Cp), lambda i, k: (i, 0)),
            ],
            scratch_shapes=[pltpu.VMEM((TM, Cp), jnp.float32)],
        ),
        out_shape=(
            jax.ShapeDtypeStruct((Mp, Cp), y_dtype),
            jax.ShapeDtypeStruct((num_m * _SUBLANE, Cp), jnp.float32),
        ),
        compiler_params=cparams1,
        cost_estimate=cost1,
    )(patches, w_mat)

    # ---- tiny XLA reduction: combine per-tile stats (Chan's group formula) ---------------
    stats = stats.reshape(num_m, _SUBLANE, Cp)
    sum_t = stats[:, 0, :]                                    # (T, Cp)
    sq_t = stats[:, 1, :]                                     # (T, Cp)
    counts = jnp.array([max(0, min(TM, M - i * TM)) for i in range(num_m)],
                       jnp.float32)[:, None]                  # valid rows per tile
    mean = jnp.sum(sum_t, axis=0) / M                         # (Cp,) padded rows are exact zeros
    mean_t = sum_t / jnp.maximum(counts, 1.0)
    m2_t = jnp.maximum(sq_t - sum_t * mean_t, 0.0)            # per-tile centered SS (mild cancel)
    m2 = jnp.sum(m2_t + counts * jnp.square(mean_t - mean[None, :]), axis=0)
    var = m2 / M                                              # biased var (train-mode BN)

    gamma_p = jnp.pad(gamma.astype(jnp.float32), (0, Cp - Cout))
    beta_p = jnp.pad(beta.astype(jnp.float32), (0, Cp - Cout))
    scale = gamma_p * jax.lax.rsqrt(var + BN_EPS)             # (Cp,)
    bias = beta_p - mean * scale                              # (Cp,)
    scale = scale.reshape(1, Cp)
    bias = bias.reshape(1, Cp)

    # ---- pass 2: streaming normalize + affine + ReLU, written back onto y's buffer -------
    out = pl.pallas_call(
        _bn_relu_kernel,
        grid_spec=pltpu.PrefetchScalarGridSpec(
            num_scalar_prefetch=0,
            grid=(num_m2,),
            in_specs=[
                pl.BlockSpec((TM2, Cp), lambda i: (i, 0)),
                pl.BlockSpec((1, Cp), lambda i: (0, 0)),
                pl.BlockSpec((1, Cp), lambda i: (0, 0)),
            ],
            out_specs=pl.BlockSpec((TM2, Cp), lambda i: (i, 0)),
        ),
        out_shape=jax.ShapeDtypeStruct((Mp, Cp), y_dtype),
        input_output_aliases={0: 0},        # reuse y's HBM buffer for the output
        compiler_params=cparams2,
    )(y, scale, bias)

    out = out[:M, :Cout].astype(jnp.float32).reshape(N, OH, OW, Cout)
    if channels_last_out:
        return out                           # kernel-native NHWC, no lane->sublane shuffle
    return out.transpose(0, 3, 1, 2)         # PyTorch NCHW convention


# ----------------------------------------------------------------------------- reference


def _reference(x, weight, gamma, beta, stride, padding):
    # Pure-JAX reference mirroring PyTorch semantics (conv + train-mode BN + ReLU).
    y = jax.lax.conv_general_dilated(
        x, weight, (stride, stride),
        [(padding, padding), (padding, padding)],
        dimension_numbers=("NCHW", "OIHW", "NCHW"))
    mean = y.mean(axis=(0, 2, 3), keepdims=True)
    var = jnp.mean(jnp.square(y - mean), axis=(0, 2, 3), keepdims=True)
    y = (y - mean) * jax.lax.rsqrt(var + BN_EPS)
    y = y * gamma.reshape(1, -1, 1, 1) + beta.reshape(1, -1, 1, 1)
    return jnp.maximum(y, 0.0)


if __name__ == "__main__":
    # BasicConv2d(in_planes=4, out_planes=8, kernel_size=3, stride=1, padding=1):
    # M = 2*16*16 = 512 rows -> 4 pass-1 tiles (block_m=128), 2 pass-2 tiles (block_m2=256),
    # so the grid, the cross-tile stat combination, and the decoupled pass-2 tiling are exercised.
    N, Cin, H, W = 2, 4, 16, 16
    Cout = 8

    key = jax.random.PRNGKey(0)
    kx, kw_key, kg, kb = jax.random.split(key, 4)
    x = jax.random.normal(kx, (N, Cin, H, W), dtype=jnp.float32)
    gamma = 1.0 + 0.1 * jax.random.normal(kg, (Cout,), dtype=jnp.float32)
    beta = 0.05 * jax.random.normal(kb, (Cout,), dtype=jnp.float32)

    # --- 3x3 conv, f32 operands: matches PyTorch f32 semantics tightly ---------------------
    w3 = 0.1 * jax.random.normal(kw_key, (Cout, Cin, 3, 3), dtype=jnp.float32)
    ref3 = _reference(x, w3, gamma, beta, 1, 1)
    run_f32 = jax.jit(functools.partial(
        basic_conv2d, stride=1, padding=1, block_m=128, block_m2=256,
        compute_dtype=jnp.float32))
    out = jax.block_until_ready(run_f32(x, w3, gamma, beta))
    assert out.shape == (N, Cout, H, W)
    assert jnp.allclose(out, ref3, atol=1e-4, rtol=1e-4), float(jnp.abs(out - ref3).max())

    # --- 3x3 conv, bf16 operands + bf16 y intermediate (perf path; f32 MXU acc + f32 stats) --
    run_bf16 = jax.jit(functools.partial(
        basic_conv2d, stride=1, padding=1, block_m=128, block_m2=256,
        compute_dtype=jnp.bfloat16))
    out_bf16 = jax.block_until_ready(run_bf16(x, w3, gamma, beta))
    assert jnp.allclose(out_bf16, ref3, atol=5e-2, rtol=5e-2), \
        float(jnp.abs(out_bf16 - ref3).max())

    # --- 1x1 conv fast path (no patch materialization) -------------------------------------
    w1 = 0.1 * jax.random.normal(kw_key, (Cout, Cin, 1, 1), dtype=jnp.float32)
    ref1 = _reference(x, w1, gamma, beta, 1, 0)
    run_1x1 = jax.jit(functools.partial(
        basic_conv2d, stride=1, padding=0, block_m=128, block_m2=512,
        compute_dtype=jnp.float32))
    out1 = jax.block_until_ready(run_1x1(x, w1, gamma, beta))
    assert jnp.allclose(out1, ref1, atol=1e-4, rtol=1e-4), float(jnp.abs(out1 - ref1).max())

    # --- wider 3x3 conv forcing the K-reduction grid axis (num_k = 2) ----------------------
    Cin2, H2, W2 = 16, 8, 8
    kx2, kw2_key = jax.random.split(kx)
    x2 = jax.random.normal(kx2, (N, Cin2, H2, W2), dtype=jnp.float32)
    w2 = 0.1 * jax.random.normal(kw2_key, (Cout, Cin2, 3, 3), dtype=jnp.float32)
    ref2 = _reference(x2, w2, gamma, beta, 1, 1)
    run_kred = jax.jit(functools.partial(
        basic_conv2d, stride=1, padding=1, block_m=64, block_m2=128, block_k=128,
        compute_dtype=jnp.float32))
    out2 = jax.block_until_ready(run_kred(x2, w2, gamma, beta))
    assert jnp.allclose(out2, ref2, atol=1e-4, rtol=1e-4), float(jnp.abs(out2 - ref2).max())

    print("KERNEL_OK")
</pallas_src>

<mosaic_0001>
module attributes {stable_mosaic.version = 11 : i64} {
  func.func @_conv_stats_kernel(%arg0: i32, %arg1: i32, %arg2: memref<128x128xf32, #tpu.memory_space<vmem>>, %arg3: memref<128x128xf32, #tpu.memory_space<vmem>>, %arg4: memref<128x128xf32, #tpu.memory_space<vmem>>, %arg5: memref<8x128xf32, #tpu.memory_space<vmem>>, %arg6: memref<128x128xf32, #tpu.memory_space<vmem>>) attributes {dimension_semantics = [#tpu.dimension_semantics<parallel>, #tpu.dimension_semantics<arbitrary>], iteration_bounds = array<i64: 4, 1>, scalar_prefetch = 0 : i64, scratch_operands = 1 : i64, tpu.core_type = #tpu.core_type<tc>, window_params = [{transform_indices = @transform_0, window_bounds = array<i64: 128, 128>}, {pipeline_mode = #tpu.pipeline_mode<synchronous>, transform_indices = @transform_1, window_bounds = array<i64: 128, 128>}, {transform_indices = @transform_2, window_bounds = array<i64: 128, 128>}, {transform_indices = @transform_3, window_bounds = array<i64: 8, 128>}]} {
    %c0 = arith.constant 0 : index
    %c0_0 = arith.constant 0 : index
    %0 = vector.load %arg2[%c0, %c0_0] : memref<128x128xf32, #tpu.memory_space<vmem>>, vector<128x128xf32>
    %c0_1 = arith.constant 0 : index
    %c0_2 = arith.constant 0 : index
    %1 = vector.load %arg3[%c0_1, %c0_2] : memref<128x128xf32, #tpu.memory_space<vmem>>, vector<128x128xf32>
    %cst = arith.constant dense<0.000000e+00> : vector<128x128xf32>
    %2 = tpu.matmul %0, %1, %cst {dimension_numbers = #tpu.dot_dimension_numbers<[1], [0], [0], [1], [0, 0, 1, 1], [], []>} : vector<128x128xf32>, vector<128x128xf32>, vector<128x128xf32> -> vector<128x128xf32>
    %c0_i32 = arith.constant 0 : i32
    %3 = arith.cmpi eq, %arg1, %c0_i32 : i32
    %4 = arith.extui %3 : i1 to i32
    %c0_i32_3 = arith.constant 0 : i32
    %5 = arith.cmpi ne, %4, %c0_i32_3 : i32
    scf.if %5 {
      %c0_8 = arith.constant 0 : index
      %c0_9 = arith.constant 0 : index
      %12 = vector.load %arg6[%c0_8, %c0_9] : memref<128x128xf32, #tpu.memory_space<vmem>>, vector<128x128xf32>
      tpu.vector_store %arg6[%c0_8, %c0_9], %2 {strides = array<i32>} : memref<128x128xf32, #tpu.memory_space<vmem>>, vector<128x128xf32>,
    } else {
    }
    %c0_i32_4 = arith.constant 0 : i32
    %6 = arith.cmpi sgt, %arg1, %c0_i32_4 : i32
    %7 = arith.extui %6 : i1 to i32
    %c0_i32_5 = arith.constant 0 : i32
    %8 = arith.cmpi ne, %7, %c0_i32_5 : i32
    scf.if %8 {
      %c0_8 = arith.constant 0 : index
      %c0_9 = arith.constant 0 : index
      %12 = vector.load %arg6[%c0_8, %c0_9] : memref<128x128xf32, #tpu.memory_space<vmem>>, vector<128x128xf32>
      %13 = arith.addf %12, %2 : vector<128x128xf32>
      %c0_10 = arith.constant 0 : index
      %c0_11 = arith.constant 0 : index
      %14 = vector.load %arg6[%c0_10, %c0_11] : memref<128x128xf32, #tpu.memory_space<vmem>>, vector<128x128xf32>
      tpu.vector_store %arg6[%c0_10, %c0_11], %13 {strides = array<i32>} : memref<128x128xf32, #tpu.memory_space<vmem>>, vector<128x128xf32>,
    } else {
    }
    %c0_i32_6 = arith.constant 0 : i32
    %9 = arith.cmpi eq, %arg1, %c0_i32_6 : i32
    %10 = arith.extui %9 : i1 to i32
    %c0_i32_7 = arith.constant 0 : i32
    %11 = arith.cmpi ne, %10, %c0_i32_7 : i32
    scf.if %11 {
      %c0_8 = arith.constant 0 : index
      %c0_9 = arith.constant 0 : index
      %12 = vector.load %arg6[%c0_8, %c0_9] : memref<128x128xf32, #tpu.memory_space<vmem>>, vector<128x128xf32>
      %c0_10 = arith.constant 0 : index
      %c0_11 = arith.constant 0 : index
      %13 = vector.load %arg4[%c0_10, %c0_11] : memref<128x128xf32, #tpu.memory_space<vmem>>, vector<128x128xf32>
      tpu.vector_store %arg4[%c0_10, %c0_11], %12 {strides = array<i32>} : memref<128x128xf32, #tpu.memory_space<vmem>>, vector<128x128xf32>,
      %cst_12 = arith.constant dense<0.000000e+00> : vector<128xf32>
      %14 = vector.multi_reduction <add>, %12, %cst_12 [0] : vector<128x128xf32> to vector<128xf32>
      %15 = vector.shape_cast %14 : vector<128xf32> to vector<1x128xf32>
      %16 = arith.mulf %12, %12 : vector<128x128xf32>
      %cst_13 = arith.constant dense<0.000000e+00> : vector<128xf32>
      %17 = vector.multi_reduction <add>, %16, %cst_13 [0] : vector<128x128xf32> to vector<128xf32>
      %18 = vector.shape_cast %17 : vector<128xf32> to vector<1x128xf32>
      %19 = tpu.iota {dimensions = array<i32: 0>} : vector<8x128xi32>
      %c0_i32_14 = arith.constant 0 : i32
      %20 = vector.broadcast %c0_i32_14 : i32 to vector<8x128xi32>
      %21 = arith.cmpi eq, %19, %20 : vector<8x128xi32>
      %cst_15 = arith.constant 0.000000e+00 : f32
      %22 = vector.shape_cast %15 : vector<1x128xf32> to vector<1x128xf32>
      %23 = vector.broadcast %22 : vector<1x128xf32> to vector<8x128xf32>
      %24 = vector.broadcast %cst_15 : f32 to vector<8x128xf32>
      %25 = arith.select %21, %23, %24 : vector<8x128xi1>, vector<8x128xf32>
      %c1_i32 = arith.constant 1 : i32
      %26 = vector.broadcast %c1_i32 : i32 to vector<8x128xi32>
      %27 = arith.cmpi eq, %19, %26 : vector<8x128xi32>
      %cst_16 = arith.constant 0.000000e+00 : f32
      %28 = vector.shape_cast %18 : vector<1x128xf32> to vector<1x128xf32>
      %29 = vector.broadcast %28 : vector<1x128xf32> to vector<8x128xf32>
      %30 = vector.broadcast %cst_16 : f32 to vector<8x128xf32>
      %31 = arith.select %27, %29, %30 : vector<8x128xi1>, vector<8x128xf32>
      %32 = arith.addf %25, %31 : vector<8x128xf32>
      %c0_17 = arith.constant 0 : index
      %c0_18 = arith.constant 0 : index
      %33 = vector.load %arg5[%c0_17, %c0_18] : memref<8x128xf32, #tpu.memory_space<vmem>>, vector<8x128xf32>
      tpu.vector_store %arg5[%c0_17, %c0_18], %32 {strides = array<i32>} : memref<8x128xf32, #tpu.memory_space<vmem>>, vector<8x128xf32>,
    } else {
    }
    return
  }
  func.func @transform_0(%arg0: i32, %arg1: i32) -> (i32, i32) {
    %c0_i32 = arith.constant 0 : i32
    return %arg0, %arg1 : i32, i32
  }
  func.func @transform_1(%arg0: i32, %arg1: i32) -> (i32, i32) {
    %c0_i32 = arith.constant 0 : i32
    %c0_i32_0 = arith.constant 0 : i32
    %c0_i32_1 = arith.constant 0 : i32
    return %c0_i32, %c0_i32_0 : i32, i32
  }
  func.func @transform_2(%arg0: i32, %arg1: i32) -> (i32, i32) {
    %c0_i32 = arith.constant 0 : i32
    %c0_i32_0 = arith.constant 0 : i32
    return %arg0, %c0_i32 : i32, i32
  }
  func.func @transform_3(%arg0: i32, %arg1: i32) -> (i32, i32) {
    %c0_i32 = arith.constant 0 : i32
    %c0_i32_0 = arith.constant 0 : i32
    return %arg0, %c0_i32 : i32, i32
  }
}

module attributes {stable_mosaic.version = 11 : i64} {
  func.func @_bn_relu_kernel(%arg0: i32, %arg1: memref<256x128xf32, #tpu.memory_space<vmem>>, %arg2: memref<1x128xf32, #tpu.memory_space<vmem>>, %arg3: memref<1x128xf32, #tpu.memory_space<vmem>>, %arg4: memref<256x128xf32, #tpu.memory_space<vmem>>) attributes {dimension_semantics = [#tpu.dimension_semantics<parallel>], iteration_bounds = array<i64: 2>, scalar_prefetch = 0 : i64, scratch_operands = 0 : i64, tpu.core_type = #tpu.core_type<tc>, window_params = [{transform_indices = @transform_0, window_bounds = array<i64: 256, 128>}, {pipeline_mode = #tpu.pipeline_mode<synchronous>, transform_indices = @transform_1, window_bounds = array<i64: 1, 128>}, {pipeline_mode = #tpu.pipeline_mode<synchronous>, transform_indices = @transform_2, window_bounds = array<i64: 1, 128>}, {transform_indices = @transform_3, window_bounds = array<i64: 256, 128>}]} {
    %c0 = arith.constant 0 : index
    %c0_0 = arith.constant 0 : index
    %0 = vector.load %arg1[%c0, %c0_0] : memref<256x128xf32, #tpu.memory_space<vmem>>, vector<256x128xf32>
    %c0_1 = arith.constant 0 : index
    %c0_2 = arith.constant 0 : index
    %1 = vector.load %arg2[%c0_1, %c0_2] : memref<1x128xf32, #tpu.memory_space<vmem>>, vector<1x128xf32>
    %2 = vector.broadcast %1 : vector<1x128xf32> to vector<256x128xf32>
    %3 = arith.mulf %0, %2 : vector<256x128xf32>
    %c0_3 = arith.constant 0 : index
    %c0_4 = arith.constant 0 : index
    %4 = vector.load %arg3[%c0_3, %c0_4] : memref<1x128xf32, #tpu.memory_space<vmem>>, vector<1x128xf32>
    %5 = vector.broadcast %4 : vector<1x128xf32> to vector<256x128xf32>
    %6 = arith.addf %3, %5 : vector<256x128xf32>
    %cst = arith.constant 0.000000e+00 : f32
    %7 = vector.broadcast %cst : f32 to vector<256x128xf32>
    %8 = arith.maximumf %6, %7 : vector<256x128xf32>
    %c0_5 = arith.constant 0 : index
    %c0_6 = arith.constant 0 : index
    %9 = vector.load %arg4[%c0_5, %c0_6] : memref<256x128xf32, #tpu.memory_space<vmem>>, vector<256x128xf32>
    tpu.vector_store %arg4[%c0_5, %c0_6], %8 {strides = array<i32>} : memref<256x128xf32, #tpu.memory_space<vmem>>, vector<256x128xf32>,
    return
  }
  func.func @transform_0(%arg0: i32) -> (i32, i32) {
    %c0_i32 = arith.constant 0 : i32
    %c0_i32_0 = arith.constant 0 : i32
    return %arg0, %c0_i32 : i32, i32
  }
  func.func @transform_1(%arg0: i32) -> (i32, i32) {
    %c0_i32 = arith.constant 0 : i32
    %c0_i32_0 = arith.constant 0 : i32
    %c0_i32_1 = arith.constant 0 : i32
    return %c0_i32, %c0_i32_0 : i32, i32
  }
  func.func @transform_2(%arg0: i32) -> (i32, i32) {
    %c0_i32 = arith.constant 0 : i32
    %c0_i32_0 = arith.constant 0 : i32
    %c0_i32_1 = arith.constant 0 : i32
    return %c0_i32, %c0_i32_0 : i32, i32
  }
  func.func @transform_3(%arg0: i32) -> (i32, i32) {
    %c0_i32 = arith.constant 0 : i32
    %c0_i32_0 = arith.constant 0 : i32
    return %arg0, %c0_i32 : i32, i32
  }
}

</mosaic_0001>

<llo_original>
// kernel: basic_conv2d.3
$region0: #{basic_conv2d.3}
  #allocation0 [shape = 'u32[]', space=smem, size = 0x4, offset = 0x4, fixed_abs, tag = 'smem constant byte address 0x4 - core index']
  #allocation1 [shape = 'u32[72,128]{1,0:T(1,128)}', space=vmem, size = 0x9000, scoped, tag = 'internal scratch']
  %s0 = inlined_call_operand.vmem [shape: f32[512,128], index: 0, kind: input, shape index: {}, may-alias: {0,3}]
  %s1 = inlined_call_operand.vmem [shape: f32[1,128], index: 1, kind: input, shape index: {}]
  %s2 = inlined_call_operand.vmem [shape: f32[1,128], index: 2, kind: input, shape index: {}]
  %s3 = inlined_call_operand.vmem [shape: f32[512,128], index: 3, kind: output, shape index: {}, may-alias: {0,3}]
  %s4 = sld [smem:[#allocation0]]
  $region45: #{basic_conv2d.3} parent=0
    _
  %s6 = ssub.s32 1, %s4
  %s7 = scalar_select 0, %s6, %s4
  loop: start=0, step=1, limit=4
  $region2: #{basic_conv2d.3} parent=0 // loop_pre_header
    _
  $region3: #{basic_conv2d.3} parent=0 // loop_header
    %s9 = sphi 0, %s13
    %p10 = scmp.ge.s32.totalorder %s9, 4
    %s19 = sphi 0, %s21
    %s22 = sphi 0, %s19
    %s23 = sphi 0, %s22
    %s39 = sphi 0, %s23
    %s43 = sphi 0, %s43
    %s45 = sphi 0, %s43
    %s46 = sphi 0, %s45
    %s60 = sphi 0, %s46
    %s64 = sphi 0, %s64
    %s66 = sphi 0, %s64
    %s67 = sphi 0, %s66
    %s81 = sphi 0, %s67
    %s87 = sphi 0, %s89
    %s90 = sphi 0, %s87
    %s91 = sphi 0, %s90
    %s107 = sphi 0, %s91
  $region4: #{basic_conv2d.3} parent=0 // loop_header_branch
    %12 = sbr.rel (%p10) target = $region8
  $region5: #{basic_conv2d.3} parent=0 // loop_body
    %s14 = ssub.s32 %s9, 1
    %s15 = ssub.s32 %s9, 2
    %s16 = sadd.s32 %s9, 1
    %s17 = ssub.s32 %s9, %s16
    %p18 = scmp.eq.s32.totalorder %s17, 0
    %s20 = sadd.s32 %s19, 1
    %s21 = scalar_select %p18, %s19, %s20
    %p24 = pneg %p18
    %p25 = scmp.eq.s32.totalorder %s9, 1
    %p26 = por %p24, %p25
    %p27 = scmp.ne.s32.totalorder %s19, %s22
    %p28 = scmp.eq.s32.totalorder %s9, 0
    %p29 = por %p27, %p28
    %p30 = scmp.ne.s32.totalorder %s19, %s22
    %p31 = scmp.eq.s32.totalorder %s14, 1
    %p32 = por %p30, %p31
    %p33 = scmp.ne.s32.totalorder %s22, %s23
    %p34 = scmp.eq.s32.totalorder %s14, 0
    %p35 = por %p33, %p34
    %p36 = scmp.ne.s32.totalorder %s22, %s23
    %p37 = scmp.eq.s32.totalorder %s15, 1
    %p38 = por %p36, %p37
    %p40 = scmp.ne.s32.totalorder %s23, %s39
    %p41 = scmp.eq.s32.totalorder %s15, 0
    %p42 = por %p40, %p41
    %s44 = sadd.s32 %s43, 1
    %p47 = scmp.eq.s32.totalorder %s9, 1
    %p48 = scmp.ne.s32.totalorder %s43, %s45
    %p49 = scmp.eq.s32.totalorder %s9, 0
    %p50 = por %p48, %p49
    %p51 = scmp.ne.s32.totalorder %s43, %s45
    %p52 = scmp.eq.s32.totalorder %s14, 1
    %p53 = por %p51, %p52
    %p54 = scmp.ne.s32.totalorder %s45, %s46
    %p55 = scmp.eq.s32.totalorder %s14, 0
    %p56 = por %p54, %p55
    %p57 = scmp.ne.s32.totalorder %s45, %s46
    %p58 = scmp.eq.s32.totalorder %s15, 1
    %p59 = por %p57, %p58
    %p61 = scmp.ne.s32.totalorder %s46, %s60
    %p62 = scmp.eq.s32.totalorder %s15, 0
    %p63 = por %p61, %p62
    %s65 = sadd.s32 %s64, 1
    %p68 = scmp.eq.s32.totalorder %s9, 1
    %p69 = scmp.ne.s32.totalorder %s64, %s66
    %p70 = scmp.eq.s32.totalorder %s9, 0
    %p71 = por %p69, %p70
    %p72 = scmp.ne.s32.totalorder %s64, %s66
    %p73 = scmp.eq.s32.totalorder %s14, 1
    %p74 = por %p72, %p73
    %p75 = scmp.ne.s32.totalorder %s66, %s67
    %p76 = scmp.eq.s32.totalorder %s14, 0
    %p77 = por %p75, %p76
    %p78 = scmp.ne.s32.totalorder %s66, %s67
    %p79 = scmp.eq.s32.totalorder %s15, 1
    %p80 = por %p78, %p79
    %p82 = scmp.ne.s32.totalorder %s67, %s81
    %p83 = scmp.eq.s32.totalorder %s15, 0
    %p84 = por %p82, %p83
    %s85 = ssub.s32 %s9, %s16
    %p86 = scmp.eq.s32.totalorder %s85, 0
    %s88 = sadd.s32 %s87, 1
    %s89 = scalar_select %p86, %s87, %s88
    %p92 = pneg %p86
    %p93 = scmp.eq.s32.totalorder %s9, 1
    %p94 = por %p92, %p93
    %p95 = scmp.ne.s32.totalorder %s87, %s90
    %p96 = scmp.eq.s32.totalorder %s9, 0
    %p97 = por %p95, %p96
    %p98 = scmp.ne.s32.totalorder %s87, %s90
    %p99 = scmp.eq.s32.totalorder %s14, 1
    %p100 = por %p98, %p99
    %p101 = scmp.ne.s32.totalorder %s90, %s91
    %p102 = scmp.eq.s32.totalorder %s14, 0
    %p103 = por %p101, %p102
    %p104 = scmp.ne.s32.totalorder %s90, %s91
    %p105 = scmp.eq.s32.totalorder %s15, 1
    %p106 = por %p104, %p105
    %p108 = scmp.ne.s32.totalorder %s91, %s107
    %p109 = scmp.eq.s32.totalorder %s15, 0
    %p110 = por %p108, %p109
    %p111 = scmp.le.s32.totalorder 1, %s9
    %p112 = scmp.lt.s32.totalorder %s9, 3
    %p113 = pnand %p111, %p112
    %p114 = pneg %p113
    // Predicated region
    $region9: #{basic_conv2d.3} parent=5 // pred_check
      _
    $region10: #{basic_conv2d.3} parent=5 // pred_check_branch
      %116 = sbr.rel (%p113) target = $region12
    $region11: #{basic_conv2d.3} parent=5 // pred_region
      %s117 = ssub.s32 %s9, 1
      // Predicated region
      $region13: #{basic_conv2d.3} parent=11 // pred_check
        %p118 = pneg %p56
      $region14: #{basic_conv2d.3} parent=11 // pred_check_branch
        %120 = sbr.rel (%p118) target = $region16
      $region15: #{basic_conv2d.3} parent=11 // pred_region
        _
      $region16: #{basic_conv2d.3} parent=11 // pred_fallthru
        _
      // Predicated region
      $region17: #{basic_conv2d.3} parent=11 // pred_check
        %p121 = pneg %p77
      $region18: #{basic_conv2d.3} parent=11 // pred_check_branch
        %123 = sbr.rel (%p121) target = $region20
      $region19: #{basic_conv2d.3} parent=11 // pred_region
        _
      $region20: #{basic_conv2d.3} parent=11 // pred_fallthru
        _
    $region12: #{basic_conv2d.3} parent=5 // pred_fallthru
      _
    %p124 = scmp.lt.s32.totalorder %s9, 2
    // Predicated region
    $region21: #{basic_conv2d.3} parent=5 // pred_check
      %p125 = pneg %p124
    $region22: #{basic_conv2d.3} parent=5 // pred_check_branch
      %127 = sbr.rel (%p125) target = $region24
    $region23: #{basic_conv2d.3} parent=5 // pred_region
      // Predicated region
      $region25: #{basic_conv2d.3} parent=23 // pred_check
        %p128 = pneg %p29
      $region26: #{basic_conv2d.3} parent=23 // pred_check_branch
        %130 = sbr.rel (%p128) target = $region28
      $region27: #{basic_conv2d.3} parent=23 // pred_region
        %s131 = smul.u32 32, %s9
        %p132 = scmp.lt.s32.totalorder %s131, 63
        %s133 = scalar_select %p132, %s131, 63
        %s134 = smul.addr %s133, 8
        %s135 = scalar_lea.vmem %s0, %s134
        %s136 = smul.u32 32, %s9
      $region28: #{basic_conv2d.3} parent=23 // pred_fallthru
        _
    $region24: #{basic_conv2d.3} parent=5 // pred_fallthru
      _
    %p137 = scmp.le.s32.totalorder 1, %s9
    %p138 = scmp.lt.s32.totalorder %s9, 3
    %p139 = pnand %p137, %p138
    %p140 = pneg %p139
    // Predicated region
    $region29: #{basic_conv2d.3} parent=5 // pred_check
      _
    $region30: #{basic_conv2d.3} parent=5 // pred_check_branch
      %142 = sbr.rel (%p139) target = $region32
    $region31: #{basic_conv2d.3} parent=5 // pred_region
      %s143 = ssub.s32 %s9, 1
      %s144 = smul.u32 32, %s14
      %p145 = scmp.lt.s32.totalorder %s144, 63
      %s146 = scalar_select %p145, %s144, 63
      %s147 = smul.addr %s146, 8
      %s148 = scalar_lea.vmem %s0, %s147
      %p149 = pneg %p35
      %p150 = pneg %p32
      %p151 = pneg %p56
      %p152 = pneg %p53
      %p153 = pneg %p77
      %p154 = pneg %p74
      %p155 = pneg %p103
      %p156 = pneg %p100
      %s157 = smul.u32 32, %s14
      %p158 = scmp.lt.s32.totalorder %s157, 63
      %s159 = scalar_select %p158, %s157, 63
      %s160 = smul.addr %s159, 8
      %s161 = scalar_lea.vmem %s3, %s160
      %s162 = smul.u32 32, %s14
      %p163 = scmp.lt.s32.totalorder %s162, 63
      %s164 = scalar_select %p163, %s162, 63
      %s165 = smul.addr %s164, 8
      %s166 = scalar_lea.vmem %s0, %s165
      %s167 = smul.u32 32, %s14
      %s168 = smul.u32 32, %s14
      %p169 = scmp.lt.s32.totalorder %s168, 63
      %s170 = scalar_select %p169, %s168, 63
      %s171 = smul.addr %s170, 8
      %s172 = scalar_lea.vmem %s3, %s171
      %s173 = smul.u32 32, %s14
      %v174 = vld [vmem:[%s166] sm:$0xff]
      %v175 = vld [vmem:[%s166 + $0x8] sm:$0xff]
      %v176 = vld [vmem:[%s166 + $0x10] sm:$0xff]
      %v177 = vld [vmem:[%s166 + $0x18] sm:$0xff]
      %v178 = vld [vmem:[%s166 + $0x20] sm:$0xff]
      %v179 = vld [vmem:[%s166 + $0x28] sm:$0xff]
      %v180 = vld [vmem:[%s166 + $0x30] sm:$0xff]
      %v181 = vld [vmem:[%s166 + $0x38] sm:$0xff]
      %v182 = vld [vmem:[%s166 + $0x40] sm:$0xff]
      %v183 = vld [vmem:[%s166 + $0x48] sm:$0xff]
      %v184 = vld [vmem:[%s166 + $0x50] sm:$0xff]
      %v185 = vld [vmem:[%s166 + $0x58] sm:$0xff]
      %v186 = vld [vmem:[%s166 + $0x60] sm:$0xff]
      %v187 = vld [vmem:[%s166 + $0x68] sm:$0xff]
      %v188 = vld [vmem:[%s166 + $0x70] sm:$0xff]
      %v189 = vld [vmem:[%s166 + $0x78] sm:$0xff]
      %v190 = vld [vmem:[%s166 + $0x80] sm:$0xff]
      %v191 = vld [vmem:[%s166 + $0x88] sm:$0xff]
      %v192 = vld [vmem:[%s166 + $0x90] sm:$0xff]
      %v193 = vld [vmem:[%s166 + $0x98] sm:$0xff]
      %v194 = vld [vmem:[%s166 + $0xa0] sm:$0xff]
      %v195 = vld [vmem:[%s166 + $0xa8] sm:$0xff]
      %v196 = vld [vmem:[%s166 + $0xb0] sm:$0xff]
      %v197 = vld [vmem:[%s166 + $0xb8] sm:$0xff]
      %v198 = vld [vmem:[%s166 + $0xc0] sm:$0xff]
      %v199 = vld [vmem:[%s166 + $0xc8] sm:$0xff]
      %v200 = vld [vmem:[%s166 + $0xd0] sm:$0xff]
      %v201 = vld [vmem:[%s166 + $0xd8] sm:$0xff]
      %v202 = vld [vmem:[%s166 + $0xe0] sm:$0xff]
      %v203 = vld [vmem:[%s166 + $0xe8] sm:$0xff]
      %v204 = vld [vmem:[%s166 + $0xf0] sm:$0xff]
      %v205 = vld [vmem:[%s166 + $0xf8] sm:$0xff]
      %v206 = vld [vmem:[%s1] sm:$0x1]
      %v208 = vperm.slane %v206, 0
      %v210 = vmul.f32 %v174, %v208
      %v211 = vmul.f32 %v175, %v208
      %v212 = vmul.f32 %v176, %v208
      %v213 = vmul.f32 %v177, %v208
      %v214 = vmul.f32 %v178, %v208
      %v215 = vmul.f32 %v179, %v208
      %v216 = vmul.f32 %v180, %v208
      %v217 = vmul.f32 %v181, %v208
      %v218 = vmul.f32 %v182, %v208
      %v219 = vmul.f32 %v183, %v208
      %v220 = vmul.f32 %v184, %v208
      %v221 = vmul.f32 %v185, %v208
      %v222 = vmul.f32 %v186, %v208
      %v223 = vmul.f32 %v187, %v208
      %v224 = vmul.f32 %v188, %v208
      %v225 = vmul.f32 %v189, %v208
      %v226 = vmul.f32 %v190, %v208
      %v227 = vmul.f32 %v191, %v208
      %v228 = vmul.f32 %v192, %v208
      %v229 = vmul.f32 %v193, %v208
      %v230 = vmul.f32 %v194, %v208
      %v231 = vmul.f32 %v195, %v208
      %v232 = vmul.f32 %v196, %v208
      %v233 = vmul.f32 %v197, %v208
      %v234 = vmul.f32 %v198, %v208
      %v235 = vmul.f32 %v199, %v208
      %v236 = vmul.f32 %v200, %v208
      %v237 = vmul.f32 %v201, %v208
      %v238 = vmul.f32 %v202, %v208
      %v239 = vmul.f32 %v203, %v208
      %v240 = vmul.f32 %v204, %v208
      %v241 = vmul.f32 %v205, %v208
      %v242 = vld [vmem:[%s2] sm:$0x1]
      %v244 = vperm.slane %v242, 0
      %v246 = vadd.f32 %v210, %v244
      %v247 = vadd.f32 %v211, %v244
      %v248 = vadd.f32 %v212, %v244
      %v249 = vadd.f32 %v213, %v244
      %v250 = vadd.f32 %v214, %v244
      %v251 = vadd.f32 %v215, %v244
      %v252 = vadd.f32 %v216, %v244
      %v253 = vadd.f32 %v217, %v244
      %v254 = vadd.f32 %v218, %v244
      %v255 = vadd.f32 %v219, %v244
      %v256 = vadd.f32 %v220, %v244
      %v257 = vadd.f32 %v221, %v244
      %v258 = vadd.f32 %v222, %v244
      %v259 = vadd.f32 %v223, %v244
      %v260 = vadd.f32 %v224, %v244
      %v261 = vadd.f32 %v225, %v244
      %v262 = vadd.f32 %v226, %v244
      %v263 = vadd.f32 %v227, %v244
      %v264 = vadd.f32 %v228, %v244
      %v265 = vadd.f32 %v229, %v244
      %v266 = vadd.f32 %v230, %v244
      %v267 = vadd.f32 %v231, %v244
      %v268 = vadd.f32 %v232, %v244
      %v269 = vadd.f32 %v233, %v244
      %v270 = vadd.f32 %v234, %v244
      %v271 = vadd.f32 %v235, %v244
      %v272 = vadd.f32 %v236, %v244
      %v273 = vadd.f32 %v237, %v244
      %v274 = vadd.f32 %v238, %v244
      %v275 = vadd.f32 %v239, %v244
      %v276 = vadd.f32 %v240, %v244
      %v277 = vadd.f32 %v241, %v244
      %v278 = vmax.f32 %v246, 0.0
      %v279 = vmax.f32 %v247, 0.0
      %v280 = vmax.f32 %v248, 0.0
      %v281 = vmax.f32 %v249, 0.0
      %v282 = vmax.f32 %v250, 0.0
      %v283 = vmax.f32 %v251, 0.0
      %v284 = vmax.f32 %v252, 0.0
      %v285 = vmax.f32 %v253, 0.0
      %v286 = vmax.f32 %v254, 0.0
      %v287 = vmax.f32 %v255, 0.0
      %v288 = vmax.f32 %v256, 0.0
      %v289 = vmax.f32 %v257, 0.0
      %v290 = vmax.f32 %v258, 0.0
      %v291 = vmax.f32 %v259, 0.0
      %v292 = vmax.f32 %v260, 0.0
      %v293 = vmax.f32 %v261, 0.0
      %v294 = vmax.f32 %v262, 0.0
      %v295 = vmax.f32 %v263, 0.0
      %v296 = vmax.f32 %v264, 0.0
      %v297 = vmax.f32 %v265, 0.0
      %v298 = vmax.f32 %v266, 0.0
      %v299 = vmax.f32 %v267, 0.0
      %v300 = vmax.f32 %v268, 0.0
      %v301 = vmax.f32 %v269, 0.0
      %v302 = vmax.f32 %v270, 0.0
      %v303 = vmax.f32 %v271, 0.0
      %v304 = vmax.f32 %v272, 0.0
      %v305 = vmax.f32 %v273, 0.0
      %v306 = vmax.f32 %v274, 0.0
      %v307 = vmax.f32 %v275, 0.0
      %v308 = vmax.f32 %v276, 0.0
      %v309 = vmax.f32 %v277, 0.0
      %310 = vst [vmem:[%s172] sm:$0xff] %v278
      %311 = vst [vmem:[%s172 + $0x8] sm:$0xff] %v279
      %312 = vst [vmem:[%s172 + $0x10] sm:$0xff] %v280
      %313 = vst [vmem:[%s172 + $0x18] sm:$0xff] %v281
      %314 = vst [vmem:[%s172 + $0x20] sm:$0xff] %v282
      %315 = vst [vmem:[%s172 + $0x28] sm:$0xff] %v283
      %316 = vst [vmem:[%s172 + $0x30] sm:$0xff] %v284
      %317 = vst [vmem:[%s172 + $0x38] sm:$0xff] %v285
      %318 = vst [vmem:[%s172 + $0x40] sm:$0xff] %v286
      %319 = vst [vmem:[%s172 + $0x48] sm:$0xff] %v287
      %320 = vst [vmem:[%s172 + $0x50] sm:$0xff] %v288
      %321 = vst [vmem:[%s172 + $0x58] sm:$0xff] %v289
      %322 = vst [vmem:[%s172 + $0x60] sm:$0xff] %v290
      %323 = vst [vmem:[%s172 + $0x68] sm:$0xff] %v291
      %324 = vst [vmem:[%s172 + $0x70] sm:$0xff] %v292
      %325 = vst [vmem:[%s172 + $0x78] sm:$0xff] %v293
      %326 = vst [vmem:[%s172 + $0x80] sm:$0xff] %v294
      %327 = vst [vmem:[%s172 + $0x88] sm:$0xff] %v295
      %328 = vst [vmem:[%s172 + $0x90] sm:$0xff] %v296
      %329 = vst [vmem:[%s172 + $0x98] sm:$0xff] %v297
      %330 = vst [vmem:[%s172 + $0xa0] sm:$0xff] %v298
      %331 = vst [vmem:[%s172 + $0xa8] sm:$0xff] %v299
      %332 = vst [vmem:[%s172 + $0xb0] sm:$0xff] %v300
      %333 = vst [vmem:[%s172 + $0xb8] sm:$0xff] %v301
      %334 = vst [vmem:[%s172 + $0xc0] sm:$0xff] %v302
      %335 = vst [vmem:[%s172 + $0xc8] sm:$0xff] %v303
      %336 = vst [vmem:[%s172 + $0xd0] sm:$0xff] %v304
      %337 = vst [vmem:[%s172 + $0xd8] sm:$0xff] %v305
      %338 = vst [vmem:[%s172 + $0xe0] sm:$0xff] %v306
      %339 = vst [vmem:[%s172 + $0xe8] sm:$0xff] %v307
      %340 = vst [vmem:[%s172 + $0xf0] sm:$0xff] %v308
      %341 = vst [vmem:[%s172 + $0xf8] sm:$0xff] %v309
      %s342 = smul.u32 32, %s14
      %p343 = scmp.lt.s32.totalorder %s342, 63
      %s344 = scalar_select %p343, %s342, 63
      %s345 = smul.addr %s344, 8
      %s346 = scalar_lea.vmem %s3, %s345
      // Predicated region
      $region33: #{basic_conv2d.3} parent=31 // pred_check
        %p347 = pneg %p100
      $region34: #{basic_conv2d.3} parent=31 // pred_check_branch
        %349 = sbr.rel (%p347) target = $region36
      $region35: #{basic_conv2d.3} parent=31 // pred_region
        %s350 = smul.u32 32, %s14
      $region36: #{basic_conv2d.3} parent=31 // pred_fallthru
        _
    $region32: #{basic_conv2d.3} parent=5 // pred_fallthru
      _
    %p351 = scmp.le.s32.totalorder 2, %s9
    // Predicated region
    $region37: #{basic_conv2d.3} parent=5 // pred_check
      %p352 = pneg %p351
    $region38: #{basic_conv2d.3} parent=5 // pred_check_branch
      %354 = sbr.rel (%p352) target = $region40
    $region39: #{basic_conv2d.3} parent=5 // pred_region
      %s355 = ssub.s32 %s9, 2
      // Predicated region
      $region41: #{basic_conv2d.3} parent=39 // pred_check
        %p356 = pneg %p106
      $region42: #{basic_conv2d.3} parent=39 // pred_check_branch
        %358 = sbr.rel (%p356) target = $region44
      $region43: #{basic_conv2d.3} parent=39 // pred_region
        %s359 = smul.u32 32, %s15
        %p360 = scmp.lt.s32.totalorder %s359, 63
        %s361 = scalar_select %p360, %s359, 63
        %s362 = smul.addr %s361, 8
        %s363 = scalar_lea.vmem %s3, %s362
      $region44: #{basic_conv2d.3} parent=39 // pred_fallthru
        _
    $region40: #{basic_conv2d.3} parent=5 // pred_fallthru
      _
  $region6: #{basic_conv2d.3} parent=0 // loop_footer
    %s13 = sadd.s32 1, %s9
  $region7: #{basic_conv2d.3} parent=0 // loop_footer_branch
    %8 = sbr.rel target = $region3
  $region8: #{basic_conv2d.3} parent=0 // loop_exit
    _

// kernel: basic_conv2d.2
$region0: #{basic_conv2d.2}
  #allocation0 [shape = 'u32[]', space=smem, size = 0x4, offset = 0x4, fixed_abs, tag = 'smem constant byte address 0x4 - core index']
  #allocation1 [shape = 'u32[72,128]{1,0:T(1,128)}', space=vmem, size = 0x9000, scoped, tag = 'internal scratch']
  #allocation2 [shape = 'f32[128,128]{1,0:T(8,128)}', space=vmem, size = 0x10000, scoped, tag = 'scratch operand']
  %s0 = inlined_call_operand.vmem [shape: f32[512,128], index: 0, kind: input, shape index: {}]
  %s1 = inlined_call_operand.vmem [shape: f32[128,128], index: 1, kind: input, shape index: {}]
  %s2 = inlined_call_operand.vmem [shape: f32[512,128], index: 2, kind: output, shape index: {0}]
  %s3 = inlined_call_operand.vmem [shape: f32[32,128], index: 3, kind: output, shape index: {1}]
  %4 = xla_tuple %s2, %s3
  %s5 = sld [smem:[#allocation0]]
  $region61: #{basic_conv2d.2} parent=0
    _
  %s7 = ssub.s32 1, %s5
  %s8 = scalar_select 0, %s7, %s5
  loop: start=0, step=1, limit=6
  $region2: #{basic_conv2d.2} parent=0 // loop_pre_header
    _
  $region3: #{basic_conv2d.2} parent=0 // loop_header
    %s10 = sphi 0, %s14
    %p11 = scmp.ge.s32.totalorder %s10, 6
    %s17 = sphi 0, %s29
    %s18 = sphi 0, %s25
    %s19 = sphi 0, %s17
    %s20 = sphi 0, %s18
    %s21 = sphi 0, %s19
    %s22 = sphi 0, %s20
    %s34 = sphi 0, %s36
    %s37 = sphi 0, %s34
    %s38 = sphi 0, %s37
    %s54 = sphi 0, %s38
    %s58 = sphi 0, %s58
    %s60 = sphi 0, %s58
    %s61 = sphi 0, %s60
    %s75 = sphi 0, %s61
    %s81 = sphi 0, %s83
    %s84 = sphi 0, %s81
    %s85 = sphi 0, %s84
    %s101 = sphi 0, %s85
    %s107 = sphi 0, %s109
    %s110 = sphi 0, %s107
    %s111 = sphi 0, %s110
    %s127 = sphi 0, %s111
  $region4: #{basic_conv2d.2} parent=0 // loop_header_branch
    %13 = sbr.rel (%p11) target = $region8
  $region5: #{basic_conv2d.2} parent=0 // loop_body
    %s15 = ssub.s32 %s10, 1
    %s16 = ssub.s32 %s10, 2
    %s23 = sadd.s32 1, %s18
    %p24 = scmp.ge.s32.totalorder %s23, 1
    %s25 = scalar_select %p24, 0, %s23
    %s26 = sadd.s32 1, %s17
    %s27 = scalar_select %p24, %s26, %s17
    %p28 = scmp.ge.s32.totalorder %s27, 4
    %s29 = scalar_select %p28, 0, %s27
    %s30 = ssub.s32 %s17, %s29
    %s31 = ssub.s32 %s18, %s25
    %s32 = sor.u32 %s30, %s31
    %p33 = scmp.eq.s32.totalorder %s32, 0
    %s35 = sadd.s32 %s34, 1
    %s36 = scalar_select %p33, %s34, %s35
    %p39 = pneg %p33
    %p40 = scmp.eq.s32.totalorder %s10, 3
    %p41 = por %p39, %p40
    %p42 = scmp.ne.s32.totalorder %s34, %s37
    %p43 = scmp.eq.s32.totalorder %s10, 0
    %p44 = por %p42, %p43
    %p45 = scmp.ne.s32.totalorder %s34, %s37
    %p46 = scmp.eq.s32.totalorder %s15, 3
    %p47 = por %p45, %p46
    %p48 = scmp.ne.s32.totalorder %s37, %s38
    %p49 = scmp.eq.s32.totalorder %s15, 0
    %p50 = por %p48, %p49
    %p51 = scmp.ne.s32.totalorder %s37, %s38
    %p52 = scmp.eq.s32.totalorder %s16, 3
    %p53 = por %p51, %p52
    %p55 = scmp.ne.s32.totalorder %s38, %s54
    %p56 = scmp.eq.s32.totalorder %s16, 0
    %p57 = por %p55, %p56
    %s59 = sadd.s32 %s58, 1
    %p62 = scmp.eq.s32.totalorder %s10, 3
    %p63 = scmp.ne.s32.totalorder %s58, %s60
    %p64 = scmp.eq.s32.totalorder %s10, 0
    %p65 = por %p63, %p64
    %p66 = scmp.ne.s32.totalorder %s58, %s60
    %p67 = scmp.eq.s32.totalorder %s15, 3
    %p68 = por %p66, %p67
    %p69 = scmp.ne.s32.totalorder %s60, %s61
    %p70 = scmp.eq.s32.totalorder %s15, 0
    %p71 = por %p69, %p70
    %p72 = scmp.ne.s32.totalorder %s60, %s61
    %p73 = scmp.eq.s32.totalorder %s16, 3
    %p74 = por %p72, %p73
    %p76 = scmp.ne.s32.totalorder %s61, %s75
    %p77 = scmp.eq.s32.totalorder %s16, 0
    %p78 = por %p76, %p77
    %s79 = ssub.s32 %s17, %s29
    %p80 = scmp.eq.s32.totalorder %s79, 0
    %s82 = sadd.s32 %s81, 1
    %s83 = scalar_select %p80, %s81, %s82
    %p86 = pneg %p80
    %p87 = scmp.eq.s32.totalorder %s10, 3
    %p88 = por %p86, %p87
    %p89 = scmp.ne.s32.totalorder %s81, %s84
    %p90 = scmp.eq.s32.totalorder %s10, 0
    %p91 = por %p89, %p90
    %p92 = scmp.ne.s32.totalorder %s81, %s84
    %p93 = scmp.eq.s32.totalorder %s15, 3
    %p94 = por %p92, %p93
    %p95 = scmp.ne.s32.totalorder %s84, %s85
    %p96 = scmp.eq.s32.totalorder %s15, 0
    %p97 = por %p95, %p96
    %p98 = scmp.ne.s32.totalorder %s84, %s85
    %p99 = scmp.eq.s32.totalorder %s16, 3
    %p100 = por %p98, %p99
    %p102 = scmp.ne.s32.totalorder %s85, %s101
    %p103 = scmp.eq.s32.totalorder %s16, 0
    %p104 = por %p102, %p103
    %s105 = ssub.s32 %s17, %s29
    %p106 = scmp.eq.s32.totalorder %s105, 0
    %s108 = sadd.s32 %s107, 1
    %s109 = scalar_select %p106, %s107, %s108
    %p112 = pneg %p106
    %p113 = scmp.eq.s32.totalorder %s10, 3
    %p114 = por %p112, %p113
    %p115 = scmp.ne.s32.totalorder %s107, %s110
    %p116 = scmp.eq.s32.totalorder %s10, 0
    %p117 = por %p115, %p116
    %p118 = scmp.ne.s32.totalorder %s107, %s110
    %p119 = scmp.eq.s32.totalorder %s15, 3
    %p120 = por %p118, %p119
    %p121 = scmp.ne.s32.totalorder %s110, %s111
    %p122 = scmp.eq.s32.totalorder %s15, 0
    %p123 = por %p121, %p122
    %p124 = scmp.ne.s32.totalorder %s110, %s111
    %p125 = scmp.eq.s32.totalorder %s16, 3
    %p126 = por %p124, %p125
    %p128 = scmp.ne.s32.totalorder %s111, %s127
    %p129 = scmp.eq.s32.totalorder %s16, 0
    %p130 = por %p128, %p129
    %p131 = scmp.le.s32.totalorder 1, %s10
    %p132 = scmp.lt.s32.totalorder %s10, 5
    %p133 = pnand %p131, %p132
    %p134 = pneg %p133
    // Predicated region
    $region9: #{basic_conv2d.2} parent=5 // pred_check
      _
    $region10: #{basic_conv2d.2} parent=5 // pred_check_branch
      %136 = sbr.rel (%p133) target = $region12
    $region11: #{basic_conv2d.2} parent=5 // pred_region
      %s137 = ssub.s32 %s10, 1
      // Predicated region
      $region13: #{basic_conv2d.2} parent=11 // pred_check
        %p138 = pneg %p71
      $region14: #{basic_conv2d.2} parent=11 // pred_check_branch
        %140 = sbr.rel (%p138) target = $region16
      $region15: #{basic_conv2d.2} parent=11 // pred_region
        _
      $region16: #{basic_conv2d.2} parent=11 // pred_fallthru
        _
    $region12: #{basic_conv2d.2} parent=5 // pred_fallthru
      _
    %p141 = scmp.lt.s32.totalorder %s10, 4
    // Predicated region
    $region17: #{basic_conv2d.2} parent=5 // pred_check
      %p142 = pneg %p141
    $region18: #{basic_conv2d.2} parent=5 // pred_check_branch
      %144 = sbr.rel (%p142) target = $region20
    $region19: #{basic_conv2d.2} parent=5 // pred_region
      // Predicated region
      $region21: #{basic_conv2d.2} parent=19 // pred_check
        %p145 = pneg %p44
      $region22: #{basic_conv2d.2} parent=19 // pred_check_branch
        %147 = sbr.rel (%p145) target = $region24
      $region23: #{basic_conv2d.2} parent=19 // pred_region
        %s148 = smul.u32 16, %s17
        %p149 = scmp.lt.s32.totalorder %s148, 63
        %s150 = scalar_select %p149, %s148, 63
        %p151 = scmp.lt.s32.totalorder %s18, 0
        %s152 = scalar_select %p151, %s18, 0
        %s153 = sadd.s32 %s152, %s150
        %s154 = smul.addr %s153, 8
        %s155 = scalar_lea.vmem %s0, %s154
        %s156 = smul.u32 16, %s17
      $region24: #{basic_conv2d.2} parent=19 // pred_fallthru
        _
    $region20: #{basic_conv2d.2} parent=5 // pred_fallthru
      _
    %p157 = scmp.le.s32.totalorder 1, %s10
    %p158 = scmp.lt.s32.totalorder %s10, 5
    %p159 = pnand %p157, %p158
    %p160 = pneg %p159
    // Predicated region
    $region25: #{basic_conv2d.2} parent=5 // pred_check
      _
    $region26: #{basic_conv2d.2} parent=5 // pred_check_branch
      %162 = sbr.rel (%p159) target = $region28
    $region27: #{basic_conv2d.2} parent=5 // pred_region
      %s163 = ssub.s32 %s10, 1
      %s164 = smul.u32 16, %s19
      %p165 = scmp.lt.s32.totalorder %s164, 63
      %s166 = scalar_select %p165, %s164, 63
      %p167 = scmp.lt.s32.totalorder %s20, 0
      %s168 = scalar_select %p167, %s20, 0
      %s169 = sadd.s32 %s168, %s166
      %s170 = smul.addr %s169, 8
      %s171 = scalar_lea.vmem %s0, %s170
      %p172 = pneg %p50
      %p173 = pneg %p47
      %p174 = pneg %p71
      %p175 = pneg %p68
      %p176 = pneg %p97
      %p177 = pneg %p94
      %s178 = smul.u32 16, %s19
      %p179 = scmp.lt.s32.totalorder %s178, 63
      %s180 = scalar_select %p179, %s178, 63
      %s181 = smul.addr %s180, 8
      %s182 = scalar_lea.vmem %s2, %s181
      %p183 = pneg %p123
      %p184 = pneg %p120
      %p185 = scmp.lt.s32.totalorder %s19, 3
      %s186 = scalar_select %p185, %s19, 3
      %s187 = smul.addr %s186, 8
      %s188 = scalar_lea.vmem %s3, %s187
      %s189 = smul.u32 16, %s19
      %p190 = scmp.lt.s32.totalorder %s189, 63
      %s191 = scalar_select %p190, %s189, 63
      %p192 = scmp.lt.s32.totalorder %s20, 0
      %s193 = scalar_select %p192, %s20, 0
      %s194 = sadd.s32 %s193, %s191
      %s195 = smul.addr %s194, 8
      %s196 = scalar_lea.vmem %s0, %s195
      %s197 = smul.u32 16, %s19
      %s198 = smul.u32 16, %s19
      %p199 = scmp.lt.s32.totalorder %s198, 63
      %s200 = scalar_select %p199, %s198, 63
      %s201 = smul.addr %s200, 8
      %s202 = scalar_lea.vmem %s2, %s201
      %s203 = smul.u32 16, %s19
      %p204 = scmp.lt.s32.totalorder %s19, 3
      %s205 = scalar_select %p204, %s19, 3
      %s206 = smul.addr %s205, 8
      %s207 = scalar_lea.vmem %s3, %s206
      %v208 = vld [vmem:[%s196] sm:$0xff]
      %v209 = vld [vmem:[%s196 + $0x8] sm:$0xff]
      %v210 = vld [vmem:[%s196 + $0x10] sm:$0xff]
      %v211 = vld [vmem:[%s196 + $0x18] sm:$0xff]
      %v212 = vld [vmem:[%s196 + $0x20] sm:$0xff]
      %v213 = vld [vmem:[%s196 + $0x28] sm:$0xff]
      %v214 = vld [vmem:[%s196 + $0x30] sm:$0xff]
      %v215 = vld [vmem:[%s196 + $0x38] sm:$0xff]
      %v216 = vld [vmem:[%s196 + $0x40] sm:$0xff]
      %v217 = vld [vmem:[%s196 + $0x48] sm:$0xff]
      %v218 = vld [vmem:[%s196 + $0x50] sm:$0xff]
      %v219 = vld [vmem:[%s196 + $0x58] sm:$0xff]
      %v220 = vld [vmem:[%s196 + $0x60] sm:$0xff]
      %v221 = vld [vmem:[%s196 + $0x68] sm:$0xff]
      %v222 = vld [vmem:[%s196 + $0x70] sm:$0xff]
      %v223 = vld [vmem:[%s196 + $0x78] sm:$0xff]
      %v224 = vld [vmem:[%s1] sm:$0xff]
      %v225 = vld [vmem:[%s1 + $0x8] sm:$0xff]
      %v226 = vld [vmem:[%s1 + $0x10] sm:$0xff]
      %v227 = vld [vmem:[%s1 + $0x18] sm:$0xff]
      %v228 = vld [vmem:[%s1 + $0x20] sm:$0xff]
      %v229 = vld [vmem:[%s1 + $0x28] sm:$0xff]
      %v230 = vld [vmem:[%s1 + $0x30] sm:$0xff]
      %v231 = vld [vmem:[%s1 + $0x38] sm:$0xff]
      %v232 = vld [vmem:[%s1 + $0x40] sm:$0xff]
      %v233 = vld [vmem:[%s1 + $0x48] sm:$0xff]
      %v234 = vld [vmem:[%s1 + $0x50] sm:$0xff]
      %v235 = vld [vmem:[%s1 + $0x58] sm:$0xff]
      %v236 = vld [vmem:[%s1 + $0x60] sm:$0xff]
      %v237 = vld [vmem:[%s1 + $0x68] sm:$0xff]
      %v238 = vld [vmem:[%s1 + $0x70] sm:$0xff]
      %v239 = vld [vmem:[%s1 + $0x78] sm:$0xff]
      %240 = vmatpush.msra.mxu0 %v239
      %241 = vmatpush.msra.mxu0 %v238
      %242 = vmatpush.msra.mxu0 %v237
      %243 = vmatpush.msra.mxu0 %v236
      %244 = vmatpush.msra.mxu0 %v235
      %245 = vmatpush.msra.mxu0 %v234
      %246 = vmatpush.msra.mxu0 %v233
      %247 = vmatpush.msra.mxu0 %v232
      %248 = vmatpush.msra.mxu0 %v231
      %249 = vmatpush.msra.mxu0 %v230
      %250 = vmatpush.msra.mxu0 %v229
      %251 = vmatpush.msra.mxu0 %v228
      %252 = vmatpush.msra.mxu0 %v227
      %253 = vmatpush.msra.mxu0 %v226
      %254 = vmatpush.msra.mxu0 %v225
      %255 = vmatpush.msra.mxu0 %v224
      %256 = vmatmul.f32.gmra.mxu0 %v208
      %v257 = vpop.f32.mrf.mxu0
      %v258 = vadd.f32 0.0, %v257
      %259 = vmatmul.f32.gmra.mxu0 %v209
      %v260 = vpop.f32.mrf.mxu0
      %v261 = vadd.f32 0.0, %v260
      %262 = vmatmul.f32.gmra.mxu0 %v210
      %v263 = vpop.f32.mrf.mxu0
      %v264 = vadd.f32 0.0, %v263
      %265 = vmatmul.f32.gmra.mxu0 %v211
      %v266 = vpop.f32.mrf.mxu0
      %v267 = vadd.f32 0.0, %v266
      %268 = vmatmul.f32.gmra.mxu0 %v212
      %v269 = vpop.f32.mrf.mxu0
      %v270 = vadd.f32 0.0, %v269
      %271 = vmatmul.f32.gmra.mxu0 %v213
      %v272 = vpop.f32.mrf.mxu0
      %v273 = vadd.f32 0.0, %v272
      %274 = vmatmul.f32.gmra.mxu0 %v214
      %v275 = vpop.f32.mrf.mxu0
      %v276 = vadd.f32 0.0, %v275
      %277 = vmatmul.f32.gmra.mxu0 %v215
      %v278 = vpop.f32.mrf.mxu0
      %v279 = vadd.f32 0.0, %v278
      %280 = vmatmul.f32.gmra.mxu0 %v216
      %v281 = vpop.f32.mrf.mxu0
      %v282 = vadd.f32 0.0, %v281
      %283 = vmatmul.f32.gmra.mxu0 %v217
      %v284 = vpop.f32.mrf.mxu0
      %v285 = vadd.f32 0.0, %v284
      %286 = vmatmul.f32.gmra.mxu0 %v218
      %v287 = vpop.f32.mrf.mxu0
      %v288 = vadd.f32 0.0, %v287
      %289 = vmatmul.f32.gmra.mxu0 %v219
      %v290 = vpop.f32.mrf.mxu0
      %v291 = vadd.f32 0.0, %v290
      %292 = vmatmul.f32.gmra.mxu0 %v220
      %v293 = vpop.f32.mrf.mxu0
      %v294 = vadd.f32 0.0, %v293
      %295 = vmatmul.f32.gmra.mxu0 %v221
      %v296 = vpop.f32.mrf.mxu0
      %v297 = vadd.f32 0.0, %v296
      %298 = vmatmul.f32.gmra.mxu0 %v222
      %v299 = vpop.f32.mrf.mxu0
      %v300 = vadd.f32 0.0, %v299
      %301 = vmatmul.f32.gmra.mxu0 %v223
      %v302 = vpop.f32.mrf.mxu0
      %v303 = vadd.f32 0.0, %v302
      %304 = vdwg.mxu0
      %p305 = scmp.eq.s32.totalorder %s20, 0
      // Predicated region
      $region29: #{basic_conv2d.2} parent=27 // pred_check
        %p306 = pneg %p305
      $region30: #{basic_conv2d.2} parent=27 // pred_check_branch
        %308 = sbr.rel (%p306) target = $region32
      $region31: #{basic_conv2d.2} parent=27 // pred_region
        %309 = vst [vmem:[#allocation2] sm:$0xff] %v258
        %310 = vst [vmem:[#allocation2 + $0x8] sm:$0xff] %v261
        %311 = vst [vmem:[#allocation2 + $0x10] sm:$0xff] %v264
        %312 = vst [vmem:[#allocation2 + $0x18] sm:$0xff] %v267
        %313 = vst [vmem:[#allocation2 + $0x20] sm:$0xff] %v270
        %314 = vst [vmem:[#allocation2 + $0x28] sm:$0xff] %v273
        %315 = vst [vmem:[#allocation2 + $0x30] sm:$0xff] %v276
        %316 = vst [vmem:[#allocation2 + $0x38] sm:$0xff] %v279
        %317 = vst [vmem:[#allocation2 + $0x40] sm:$0xff] %v282
        %318 = vst [vmem:[#allocation2 + $0x48] sm:$0xff] %v285
        %319 = vst [vmem:[#allocation2 + $0x50] sm:$0xff] %v288
        %320 = vst [vmem:[#allocation2 + $0x58] sm:$0xff] %v291
        %321 = vst [vmem:[#allocation2 + $0x60] sm:$0xff] %v294
        %322 = vst [vmem:[#allocation2 + $0x68] sm:$0xff] %v297
        %323 = vst [vmem:[#allocation2 + $0x70] sm:$0xff] %v300
        %324 = vst [vmem:[#allocation2 + $0x78] sm:$0xff] %v303
      $region32: #{basic_conv2d.2} parent=27 // pred_fallthru
        _
      %p325 = scmp.gt.s32.totalorder %s20, 0
      // Predicated region
      $region33: #{basic_conv2d.2} parent=27 // pred_check
        %p326 = pneg %p325
      $region34: #{basic_conv2d.2} parent=27 // pred_check_branch
        %328 = sbr.rel (%p326) target = $region36
      $region35: #{basic_conv2d.2} parent=27 // pred_region
        %v329 = vld [vmem:[#allocation2] sm:$0xff]
        %v330 = vld [vmem:[#allocation2 + $0x8] sm:$0xff]
        %v331 = vld [vmem:[#allocation2 + $0x10] sm:$0xff]
        %v332 = vld [vmem:[#allocation2 + $0x18] sm:$0xff]
        %v333 = vld [vmem:[#allocation2 + $0x20] sm:$0xff]
        %v334 = vld [vmem:[#allocation2 + $0x28] sm:$0xff]
        %v335 = vld [vmem:[#allocation2 + $0x30] sm:$0xff]
        %v336 = vld [vmem:[#allocation2 + $0x38] sm:$0xff]
        %v337 = vld [vmem:[#allocation2 + $0x40] sm:$0xff]
        %v338 = vld [vmem:[#allocation2 + $0x48] sm:$0xff]
        %v339 = vld [vmem:[#allocation2 + $0x50] sm:$0xff]
        %v340 = vld [vmem:[#allocation2 + $0x58] sm:$0xff]
        %v341 = vld [vmem:[#allocation2 + $0x60] sm:$0xff]
        %v342 = vld [vmem:[#allocation2 + $0x68] sm:$0xff]
        %v343 = vld [vmem:[#allocation2 + $0x70] sm:$0xff]
        %v344 = vld [vmem:[#allocation2 + $0x78] sm:$0xff]
        %v345 = vadd.f32 %v329, %v258
        %v346 = vadd.f32 %v330, %v261
        %v347 = vadd.f32 %v331, %v264
        %v348 = vadd.f32 %v332, %v267
        %v349 = vadd.f32 %v333, %v270
        %v350 = vadd.f32 %v334, %v273
        %v351 = vadd.f32 %v335, %v276
        %v352 = vadd.f32 %v336, %v279
        %v353 = vadd.f32 %v337, %v282
        %v354 = vadd.f32 %v338, %v285
        %v355 = vadd.f32 %v339, %v288
        %v356 = vadd.f32 %v340, %v291
        %v357 = vadd.f32 %v341, %v294
        %v358 = vadd.f32 %v342, %v297
        %v359 = vadd.f32 %v343, %v300
        %v360 = vadd.f32 %v344, %v303
        %361 = vst [vmem:[#allocation2] sm:$0xff] %v345
        %362 = vst [vmem:[#allocation2 + $0x8] sm:$0xff] %v346
        %363 = vst [vmem:[#allocation2 + $0x10] sm:$0xff] %v347
        %364 = vst [vmem:[#allocation2 + $0x18] sm:$0xff] %v348
        %365 = vst [vmem:[#allocation2 + $0x20] sm:$0xff] %v349
        %366 = vst [vmem:[#allocation2 + $0x28] sm:$0xff] %v350
        %367 = vst [vmem:[#allocation2 + $0x30] sm:$0xff] %v351
        %368 = vst [vmem:[#allocation2 + $0x38] sm:$0xff] %v352
        %369 = vst [vmem:[#allocation2 + $0x40] sm:$0xff] %v353
        %370 = vst [vmem:[#allocation2 + $0x48] sm:$0xff] %v354
        %371 = vst [vmem:[#allocation2 + $0x50] sm:$0xff] %v355
        %372 = vst [vmem:[#allocation2 + $0x58] sm:$0xff] %v356
        %373 = vst [vmem:[#allocation2 + $0x60] sm:$0xff] %v357
        %374 = vst [vmem:[#allocation2 + $0x68] sm:$0xff] %v358
        %375 = vst [vmem:[#allocation2 + $0x70] sm:$0xff] %v359
        %376 = vst [vmem:[#allocation2 + $0x78] sm:$0xff] %v360
      $region36: #{basic_conv2d.2} parent=27 // pred_fallthru
        _
      // Predicated region
      $region37: #{basic_conv2d.2} parent=27 // pred_check
        %p377 = pneg %p305
      $region38: #{basic_conv2d.2} parent=27 // pred_check_branch
        %379 = sbr.rel (%p377) target = $region40
      $region39: #{basic_conv2d.2} parent=27 // pred_region
        %v380 = vld [vmem:[#allocation2] sm:$0xff]
        %v381 = vld [vmem:[#allocation2 + $0x8] sm:$0xff]
        %v382 = vld [vmem:[#allocation2 + $0x10] sm:$0xff]
        %v383 = vld [vmem:[#allocation2 + $0x18] sm:$0xff]
        %v384 = vld [vmem:[#allocation2 + $0x20] sm:$0xff]
        %v385 = vld [vmem:[#allocation2 + $0x28] sm:$0xff]
        %v386 = vld [vmem:[#allocation2 + $0x30] sm:$0xff]
        %v387 = vld [vmem:[#allocation2 + $0x38] sm:$0xff]
        %v388 = vld [vmem:[#allocation2 + $0x40] sm:$0xff]
        %v389 = vld [vmem:[#allocation2 + $0x48] sm:$0xff]
        %v390 = vld [vmem:[#allocation2 + $0x50] sm:$0xff]
        %v391 = vld [vmem:[#allocation2 + $0x58] sm:$0xff]
        %v392 = vld [vmem:[#allocation2 + $0x60] sm:$0xff]
        %v393 = vld [vmem:[#allocation2 + $0x68] sm:$0xff]
        %v394 = vld [vmem:[#allocation2 + $0x70] sm:$0xff]
        %v395 = vld [vmem:[#allocation2 + $0x78] sm:$0xff]
        %396 = vst [vmem:[%s202] sm:$0xff] %v380
        %397 = vst [vmem:[%s202 + $0x8] sm:$0xff] %v381
        %398 = vst [vmem:[%s202 + $0x10] sm:$0xff] %v382
        %399 = vst [vmem:[%s202 + $0x18] sm:$0xff] %v383
        %400 = vst [vmem:[%s202 + $0x20] sm:$0xff] %v384
        %401 = vst [vmem:[%s202 + $0x28] sm:$0xff] %v385
        %402 = vst [vmem:[%s202 + $0x30] sm:$0xff] %v386
        %403 = vst [vmem:[%s202 + $0x38] sm:$0xff] %v387
        %404 = vst [vmem:[%s202 + $0x40] sm:$0xff] %v388
        %405 = vst [vmem:[%s202 + $0x48] sm:$0xff] %v389
        %406 = vst [vmem:[%s202 + $0x50] sm:$0xff] %v390
        %407 = vst [vmem:[%s202 + $0x58] sm:$0xff] %v391
        %408 = vst [vmem:[%s202 + $0x60] sm:$0xff] %v392
        %409 = vst [vmem:[%s202 + $0x68] sm:$0xff] %v393
        %410 = vst [vmem:[%s202 + $0x70] sm:$0xff] %v394
        %411 = vst [vmem:[%s202 + $0x78] sm:$0xff] %v395
        %v412 = vadd.f32 %v380, %v381
        %v413 = vadd.f32 %v412, %v382
        %v414 = vadd.f32 %v413, %v383
        %v415 = vadd.f32 %v414, %v384
        %v416 = vadd.f32 %v415, %v385
        %v417 = vadd.f32 %v416, %v386
        %v418 = vadd.f32 %v417, %v387
        %v419 = vadd.f32 %v418, %v388
        %v420 = vadd.f32 %v419, %v389
        %v421 = vadd.f32 %v420, %v390
        %v422 = vadd.f32 %v421, %v391
        %v423 = vadd.f32 %v422, %v392
        %v424 = vadd.f32 %v423, %v393
        %v425 = vadd.f32 %v424, %v394
        %v426 = vadd.f32 %v425, %v395
        %v427 = vrot.slane %v426, 4
        %v428 = vadd.f32 %v426, %v427
        %v429 = vrot.slane %v428, 2
        %v430 = vadd.f32 %v428, %v429
        %v431 = vrot.slane %v430, 1
        %v432 = vadd.f32 %v430, %v431
        %v433 = vmul.f32 %v380, %v380
        %v434 = vmul.f32 %v381, %v381
        %v435 = vmul.f32 %v382, %v382
        %v436 = vmul.f32 %v383, %v383
        %v437 = vmul.f32 %v384, %v384
        %v438 = vmul.f32 %v385, %v385
        %v439 = vmul.f32 %v386, %v386
        %v440 = vmul.f32 %v387, %v387
        %v441 = vmul.f32 %v388, %v388
        %v442 = vmul.f32 %v389, %v389
        %v443 = vmul.f32 %v390, %v390
        %v444 = vmul.f32 %v391, %v391
        %v445 = vmul.f32 %v392, %v392
        %v446 = vmul.f32 %v393, %v393
        %v447 = vmul.f32 %v394, %v394
        %v448 = vmul.f32 %v395, %v395
        %v449 = vadd.f32 %v433, %v434
        %v450 = vadd.f32 %v449, %v435
        %v451 = vadd.f32 %v450, %v436
        %v452 = vadd.f32 %v451, %v437
        %v453 = vadd.f32 %v452, %v438
        %v454 = vadd.f32 %v453, %v439
        %v455 = vadd.f32 %v454, %v440
        %v456 = vadd.f32 %v455, %v441
        %v457 = vadd.f32 %v456, %v442
        %v458 = vadd.f32 %v457, %v443
        %v459 = vadd.f32 %v458, %v444
        %v460 = vadd.f32 %v459, %v445
        %v461 = vadd.f32 %v460, %v446
        %v462 = vadd.f32 %v461, %v447
        %v463 = vadd.f32 %v462, %v448
        %v464 = vrot.slane %v463, 4
        %v465 = vadd.f32 %v463, %v464
        %v466 = vrot.slane %v465, 2
        %v467 = vadd.f32 %v465, %v466
        %v468 = vrot.slane %v467, 1
        %v469 = vadd.f32 %v467, %v468
        %v470 = vlaneseq
        %v471 = vshrl.u32 %v470, 7
        %vm472 = vcmp.eq.s32.totalorder %v471, 0
        %v473 = vsel %vm472, %v432, 0.0
        %vm474 = vcmp.eq.s32.totalorder %v471, 1
        %v475 = vsel %vm474, %v469, 0.0
        %v476 = vadd.f32 %v473, %v475
        %477 = vst [vmem:[%s207] sm:$0xff] %v476
      $region40: #{basic_conv2d.2} parent=27 // pred_fallthru
        _
      %s478 = smul.u32 16, %s19
      %p479 = scmp.lt.s32.totalorder %s478, 63
      %s480 = scalar_select %p479, %s478, 63
      %s481 = smul.addr %s480, 8
      %s482 = scalar_lea.vmem %s2, %s481
      %p483 = scmp.lt.s32.totalorder %s19, 3
      %s484 = scalar_select %p483, %s19, 3
      %s485 = smul.addr %s484, 8
      %s486 = scalar_lea.vmem %s3, %s485
      // Predicated region
      $region41: #{basic_conv2d.2} parent=27 // pred_check
        %p487 = pneg %p94
      $region42: #{basic_conv2d.2} parent=27 // pred_check_branch
        %489 = sbr.rel (%p487) target = $region44
      $region43: #{basic_conv2d.2} parent=27 // pred_region
        %s490 = smul.u32 16, %s19
      $region44: #{basic_conv2d.2} parent=27 // pred_fallthru
        _
      // Predicated region
      $region45: #{basic_conv2d.2} parent=27 // pred_check
        %p491 = pneg %p120
      $region46: #{basic_conv2d.2} parent=27 // pred_check_branch
        %493 = sbr.rel (%p491) target = $region48
      $region47: #{basic_conv2d.2} parent=27 // pred_region
        _
      $region48: #{basic_conv2d.2} parent=27 // pred_fallthru
        _
    $region28: #{basic_conv2d.2} parent=5 // pred_fallthru
      _
    %p494 = scmp.le.s32.totalorder 2, %s10
    // Predicated region
    $region49: #{basic_conv2d.2} parent=5 // pred_check
      %p495 = pneg %p494
    $region50: #{basic_conv2d.2} parent=5 // pred_check_branch
      %497 = sbr.rel (%p495) target = $region52
    $region51: #{basic_conv2d.2} parent=5 // pred_region
      %s498 = ssub.s32 %s10, 2
      // Predicated region
      $region53: #{basic_conv2d.2} parent=51 // pred_check
        %p499 = pneg %p100
      $region54: #{basic_conv2d.2} parent=51 // pred_check_branch
        %501 = sbr.rel (%p499) target = $region56
      $region55: #{basic_conv2d.2} parent=51 // pred_region
        %s502 = smul.u32 16, %s21
        %p503 = scmp.lt.s32.totalorder %s502, 63
        %s504 = scalar_select %p503, %s502, 63
        %s505 = smul.addr %s504, 8
        %s506 = scalar_lea.vmem %s2, %s505
      $region56: #{basic_conv2d.2} parent=51 // pred_fallthru
        _
      // Predicated region
      $region57: #{basic_conv2d.2} parent=51 // pred_check
        %p507 = pneg %p126
      $region58: #{basic_conv2d.2} parent=51 // pred_check_branch
        %509 = sbr.rel (%p507) target = $region60
      $region59: #{basic_conv2d.2} parent=51 // pred_region
        %p510 = scmp.lt.s32.totalorder %s21, 3
        %s511 = scalar_select %p510, %s21, 3
        %s512 = smul.addr %s511, 8
        %s513 = scalar_lea.vmem %s3, %s512
      $region60: #{basic_conv2d.2} parent=51 // pred_fallthru
        _
    $region52: #{basic_conv2d.2} parent=5 // pred_fallthru
      _
  $region6: #{basic_conv2d.2} parent=0 // loop_footer
    %s14 = sadd.s32 1, %s10
  $region7: #{basic_conv2d.2} parent=0 // loop_footer_branch
    %9 = sbr.rel target = $region3
  $region8: #{basic_conv2d.2} parent=0 // loop_exit
    _

</llo_original>
